<compile_context>
chip_gen: v6e
topology: v6e:2x2x1
jax: 0.10.0
libtpu: 0.0.40
codegen_flags: <defaults>
</compile_context>

<pallas_src>
import functools

import jax
import jax.numpy as jnp
from jax.experimental import pallas as pl
from jax.experimental.pallas import tpu as pltpu


def _upconv_kernel(patch_ref, wbd_ref, w1_ref, b1_ref, w2_ref, b2_ref, o_ref,
                   *, Nb, HW, Cout, eps):
    # patch_ref : (Nb, HW, 16*Cin) bf16   per-(phase,tap) im2col of the padded input
    # wbd_ref   : (16*Cin, 4*Cout) bf16   block-diagonal folded sub-pixel conv weight
    # w1_ref    : (Cout, Cr) f32, b1_ref: (1, Cr)    SE fc1 (pre-transposed)
    # w2_ref    : (Cr, Cout) f32, b2_ref: (1, Cout)  SE fc2 (pre-transposed)
    # o_ref     : (Nb, HW, 4*Cout)        channel col = (2*ph + pw)*Cout + co
    C4 = 4 * Cout
    K = patch_ref.shape[-1]
    inv_spatial = 1.0 / (4.0 * HW)

    # --- transposed conv: ONE lane-dense MXU matmul for the whole block ---
    patch = patch_ref[...].reshape(Nb * HW, K)                      # bf16, no cast
    acc = jnp.dot(patch, wbd_ref[...],
                  preferred_element_type=jnp.float32)               # (Nb*HW, 4*Cout) f32
    acc = acc.reshape(Nb, HW, C4)
    # (ConvTranspose bias omitted: a per-channel constant is removed by InstanceNorm.)

    def phase_mean(t):
        # (Nb, HW, C4) -> per-(sample, channel) mean over all 4*HW spatial positions.
        cs = jnp.sum(t, axis=1)                                     # (Nb, C4)
        return (cs[:, 0:Cout] + cs[:, Cout:2 * Cout] +
                cs[:, 2 * Cout:3 * Cout] + cs[:, 3 * Cout:4 * Cout]) * inv_spatial

    def tile_phases(v):
        # (Nb, Cout) -> (Nb, 1, C4): repeat per-channel scalars across the 4 phase blocks.
        return jnp.concatenate([v, v, v, v], axis=-1)[:, None, :]

    # --- InstanceNorm2d(affine=False) + ReLU (per-sample, per-channel stats) ---
    mean = phase_mean(acc)                                          # (Nb, Cout)
    cent = acc - tile_phases(mean)
    var = phase_mean(cent * cent)                                   # biased variance
    h = jnp.maximum(cent * tile_phases(jax.lax.rsqrt(var + eps)), 0.0)

    # --- SEBlock: global avg pool -> fc1 -> ReLU -> fc2 -> sigmoid -> scale ---
    y = phase_mean(h)                                               # (Nb, Cout)
    z = jnp.maximum(jnp.dot(y, w1_ref[...], preferred_element_type=jnp.float32)
                    + b1_ref[...], 0.0)                             # (Nb, Cr)
    s = jax.nn.sigmoid(jnp.dot(z, w2_ref[...], preferred_element_type=jnp.float32)
                       + b2_ref[...])                               # (Nb, Cout)

    o_ref[...] = (h * tile_phases(s)).astype(o_ref.dtype)


def _pick_block_n(N, max_block=8):
    """Largest divisor of N <= max_block that still leaves >= 2 grid points (v7x)."""
    if N <= 1:
        return 1
    best = 1
    for nb in range(1, min(max_block, N // 2) + 1):
        if N % nb == 0:
            best = nb
    return best


def upconv_block_forward(x_nchw, params, *, block_n=None, out_dtype=jnp.float32):
    """UpConvBlock forward.  x_nchw: (N, Cin, H, W) f32 -> (N, Cout, 2H, 2W) f32."""
    w_ct, b_ct, fc1_w, fc1_b, fc2_w, fc2_b = params
    del b_ct  # exactly cancelled by InstanceNorm's per-channel mean subtraction
    N, Cin, H, W = x_nchw.shape
    Cout = w_ct.shape[1]
    Cr = fc1_w.shape[0]
    HW = H * W
    K = 16 * Cin
    C4 = 4 * Cout

    if block_n is None:
        block_n = _pick_block_n(N)
    assert N % block_n == 0

    # --- glue: NCHW -> NHWC, 1-px halo, per-(phase,tap) im2col -> (N, HW, 16*Cin) bf16 ---
    x = jnp.transpose(x_nchw, (0, 2, 3, 1)).astype(jnp.float32)
    xpad = jnp.pad(x, ((0, 0), (1, 1), (1, 1), (0, 0)))             # (N, H+2, W+2, Cin)
    pieces = []
    for ph in range(2):
        for pw in range(2):
            for dh in range(2):
                for dw in range(2):
                    pieces.append(xpad[:, ph + dh:ph + dh + H, pw + dw:pw + dw + W, :])
    patches = jnp.concatenate(pieces, axis=-1).reshape(N, HW, K).astype(jnp.bfloat16)

    # Block-diagonal folded weight:
    #   out[2m+ph, 2n+pw, co] = sum_{dh,dw,ci} xpad[m+ph+dh, n+pw+dw, ci]
    #                                          * w_ct[ci, co, 3-ph-2*dh, 3-pw-2*dw]
    # Column layout of the output: col = (2*ph + pw)*Cout + co.
    wbd = jnp.zeros((K, C4), jnp.float32)
    for ph in range(2):
        for pw in range(2):
            p = 2 * ph + pw
            for dh in range(2):
                for dw in range(2):
                    t = 2 * dh + dw
                    blk = w_ct[:, :, 3 - ph - 2 * dh, 3 - pw - 2 * dw]   # (Cin, Cout)
                    r0 = (p * 4 + t) * Cin
                    wbd = wbd.at[r0:r0 + Cin, p * Cout:(p + 1) * Cout].set(blk)
    wbd = wbd.astype(jnp.bfloat16)

    # SE fc weights, pre-transposed so the kernel does plain row @ W.
    w1t = jnp.transpose(fc1_w).astype(jnp.float32)   # (Cout, Cr)
    b1 = fc1_b.reshape(1, Cr).astype(jnp.float32)
    w2t = jnp.transpose(fc2_w).astype(jnp.float32)   # (Cr, Cout)
    b2 = fc2_b.reshape(1, Cout).astype(jnp.float32)

    kernel = functools.partial(_upconv_kernel, Nb=block_n, HW=HW, Cout=Cout, eps=1e-5)

    out_rows = pl.pallas_call(
        kernel,
        out_shape=jax.ShapeDtypeStruct((N, HW, C4), out_dtype),
        grid=(N // block_n,),
        in_specs=[
            pl.BlockSpec((block_n, HW, K), lambda b: (b, 0, 0)),
            pl.BlockSpec((K, C4), lambda b: (0, 0)),
            pl.BlockSpec((Cout, Cr), lambda b: (0, 0)),
            pl.BlockSpec((1, Cr), lambda b: (0, 0)),
            pl.BlockSpec((Cr, Cout), lambda b: (0, 0)),
            pl.BlockSpec((1, Cout), lambda b: (0, 0)),
        ],
        out_specs=pl.BlockSpec((block_n, HW, C4), lambda b: (b, 0, 0)),
        compiler_params=pltpu.CompilerParams(
            dimension_semantics=("parallel",)),
    )(patches, wbd, w1t, b1, w2t, b2)

    # Interleave the 4 phases into NCHW: col (ph, pw, co), row (m, n) -> (2m+ph, 2n+pw)
    out = out_rows.reshape(N, H, W, 2, 2, Cout)
    out = jnp.transpose(out, (0, 5, 1, 3, 2, 4))        # (N, Cout, H, 2, W, 2)
    return out.reshape(N, Cout, 2 * H, 2 * W).astype(jnp.float32)


def _reference_bf16(x_nchw, params):
    """Independent zero-insertion formulation with the SAME bf16 rounding of x / conv weight
    as the kernel (f32 accumulation) -- tight structural check of the sub-pixel indexing."""
    w_ct, b_ct, fc1_w, fc1_b, fc2_w, fc2_b = params
    N, Cin, H, W = x_nchw.shape
    Cout, K = w_ct.shape[1], w_ct.shape[2]
    Ho, Wo = 2 * H, 2 * W

    x = jnp.transpose(x_nchw, (0, 2, 3, 1)).astype(jnp.bfloat16)
    xd = jnp.zeros((N, 2 * H - 1, 2 * W - 1, Cin), jnp.bfloat16).at[:, ::2, ::2, :].set(x)
    xp = jnp.pad(xd, ((0, 0), (2, 2), (2, 2), (0, 0)))
    w_eq = jnp.transpose(jnp.flip(w_ct, axis=(2, 3)), (2, 3, 0, 1)).astype(jnp.bfloat16)

    acc = jnp.zeros((N, Ho, Wo, Cout), jnp.float32)
    for kh in range(K):
        for kw in range(K):
            acc += jnp.einsum("nhwc,cd->nhwd",
                              xp[:, kh:kh + Ho, kw:kw + Wo, :], w_eq[kh, kw],
                              preferred_element_type=jnp.float32)
    acc += b_ct[None, None, None, :]

    mean = jnp.mean(acc, axis=(1, 2), keepdims=True)
    var = jnp.mean((acc - mean) ** 2, axis=(1, 2), keepdims=True)
    h = jnp.maximum((acc - mean) * jax.lax.rsqrt(var + 1e-5), 0.0)

    y = jnp.mean(h, axis=(1, 2))
    z = jnp.maximum(y @ fc1_w.T + fc1_b, 0.0)
    s = jax.nn.sigmoid(z @ fc2_w.T + fc2_b)
    out = h * s[:, None, None, :]
    return jnp.transpose(out, (0, 3, 1, 2))


def _reference_f32(x_nchw, params):
    """Exact f32 module semantics (PyTorch UpConvBlock forward)."""
    w_ct, b_ct, fc1_w, fc1_b, fc2_w, fc2_b = params
    N, Cin, H, W = x_nchw.shape
    Cout, K = w_ct.shape[1], w_ct.shape[2]
    Ho, Wo = 2 * H, 2 * W

    x = jnp.transpose(x_nchw, (0, 2, 3, 1))
    xd = jnp.zeros((N, 2 * H - 1, 2 * W - 1, Cin), jnp.float32).at[:, ::2, ::2, :].set(x)
    xp = jnp.pad(xd, ((0, 0), (2, 2), (2, 2), (0, 0)))
    w_eq = jnp.transpose(jnp.flip(w_ct, axis=(2, 3)), (2, 3, 0, 1))

    acc = jnp.zeros((N, Ho, Wo, Cout), jnp.float32)
    for kh in range(K):
        for kw in range(K):
            acc += jnp.einsum("nhwc,cd->nhwd",
                              xp[:, kh:kh + Ho, kw:kw + Wo, :], w_eq[kh, kw])
    acc += b_ct[None, None, None, :]

    mean = jnp.mean(acc, axis=(1, 2), keepdims=True)
    var = jnp.mean((acc - mean) ** 2, axis=(1, 2), keepdims=True)
    h = jnp.maximum((acc - mean) / jnp.sqrt(var + 1e-5), 0.0)

    y = jnp.mean(h, axis=(1, 2))
    z = jnp.maximum(y @ fc1_w.T + fc1_b, 0.0)
    s = jax.nn.sigmoid(z @ fc2_w.T + fc2_b)
    out = h * s[:, None, None, :]
    return jnp.transpose(out, (0, 3, 1, 2))


if __name__ == "__main__":
    # Small shapes: batch=2, in_channels=8, out_channels=32, spatial 8 -> 16
    N, Cin, H, W = 2, 8, 8, 8
    Cout, K, reduction = 32, 4, 16
    Cr = Cout // reduction

    key = jax.random.PRNGKey(0)
    ks = jax.random.split(key, 7)
    x = jax.random.normal(ks[0], (N, Cin, H, W), jnp.float32)

    # Parameter shapes follow nn.ConvTranspose2d / nn.Linear
    w_ct = 0.1 * jax.random.normal(ks[1], (Cin, Cout, K, K), jnp.float32)
    b_ct = 0.1 * jax.random.normal(ks[2], (Cout,), jnp.float32)
    fc1_w = 0.2 * jax.random.normal(ks[3], (Cr, Cout), jnp.float32)
    fc1_b = 0.1 * jax.random.normal(ks[4], (Cr,), jnp.float32)
    fc2_w = 0.2 * jax.random.normal(ks[5], (Cout, Cr), jnp.float32)
    fc2_b = 0.1 * jax.random.normal(ks[6], (Cout,), jnp.float32)
    params = (w_ct, b_ct, fc1_w, fc1_b, fc2_w, fc2_b)

    out = jax.block_until_ready(upconv_block_forward(x, params))
    ref_bf16 = jax.block_until_ready(_reference_bf16(x, params))
    ref_f32 = jax.block_until_ready(_reference_f32(x, params))

    assert out.shape == (N, Cout, 2 * H, 2 * W), out.shape
    # Tight check: same bf16 rounding of conv inputs, independent (zero-insertion) formulation.
    assert jnp.allclose(out, ref_bf16, rtol=1e-3, atol=1e-3), \
        float(jnp.max(jnp.abs(out - ref_bf16)))
    # Loose structural check vs exact f32 module semantics (only diff = bf16 conv inputs).
    assert jnp.allclose(out, ref_f32, rtol=1e-1, atol=1e-1), \
        float(jnp.max(jnp.abs(out - ref_f32)))
    print("KERNEL_OK")
</pallas_src>

<mosaic_0001>
module attributes {stable_mosaic.version = 11 : i64} {
  func.func @_upconv_kernel(%arg0: i32, %arg1: memref<1x64x128xbf16, #tpu.memory_space<vmem>>, %arg2: memref<128x128xbf16, #tpu.memory_space<vmem>>, %arg3: memref<32x2xf32, #tpu.memory_space<vmem>>, %arg4: memref<1x2xf32, #tpu.memory_space<vmem>>, %arg5: memref<2x32xf32, #tpu.memory_space<vmem>>, %arg6: memref<1x32xf32, #tpu.memory_space<vmem>>, %arg7: memref<1x64x128xf32, #tpu.memory_space<vmem>>) attributes {dimension_semantics = [#tpu.dimension_semantics<parallel>], iteration_bounds = array<i64: 2>, scalar_prefetch = 0 : i64, scratch_operands = 0 : i64, tpu.core_type = #tpu.core_type<tc>, window_params = [{transform_indices = @transform_0, window_bounds = array<i64: 1, 64, 128>}, {pipeline_mode = #tpu.pipeline_mode<synchronous>, transform_indices = @transform_1, window_bounds = array<i64: 128, 128>}, {pipeline_mode = #tpu.pipeline_mode<synchronous>, transform_indices = @transform_2, window_bounds = array<i64: 32, 2>}, {pipeline_mode = #tpu.pipeline_mode<synchronous>, transform_indices = @transform_3, window_bounds = array<i64: 1, 2>}, {pipeline_mode = #tpu.pipeline_mode<synchronous>, transform_indices = @transform_4, window_bounds = array<i64: 2, 32>}, {pipeline_mode = #tpu.pipeline_mode<synchronous>, transform_indices = @transform_5, window_bounds = array<i64: 1, 32>}, {transform_indices = @transform_6, window_bounds = array<i64: 1, 64, 128>}]} {
    %c0 = arith.constant 0 : index
    %c0_0 = arith.constant 0 : index
    %c0_1 = arith.constant 0 : index
    %0 = vector.load %arg1[%c0, %c0_0, %c0_1] : memref<1x64x128xbf16, #tpu.memory_space<vmem>>, vector<1x64x128xbf16>
    %1 = vector.shape_cast %0 : vector<1x64x128xbf16> to vector<64x128xbf16>
    %c0_2 = arith.constant 0 : index
    %c0_3 = arith.constant 0 : index
    %2 = vector.load %arg2[%c0_2, %c0_3] : memref<128x128xbf16, #tpu.memory_space<vmem>>, vector<128x128xbf16>
    %cst = arith.constant dense<0.000000e+00> : vector<64x128xf32>
    %3 = tpu.matmul %1, %2, %cst {dimension_numbers = #tpu.dot_dimension_numbers<[1], [0], [0], [1], [0, 0, 1, 1], [], []>} : vector<64x128xbf16>, vector<128x128xbf16>, vector<64x128xf32> -> vector<64x128xf32>
    %4 = vector.shape_cast %3 : vector<64x128xf32> to vector<1x64x128xf32>
    %cst_4 = arith.constant dense<0.000000e+00> : vector<1x128xf32>
    %5 = vector.multi_reduction <add>, %4, %cst_4 [1] : vector<1x64x128xf32> to vector<1x128xf32>
    %6 = vector.extract_strided_slice %5 {offsets = [0, 0], sizes = [1, 32], strides = [1, 1]} : vector<1x128xf32> to vector<1x32xf32>
    %7 = vector.extract_strided_slice %5 {offsets = [0, 32], sizes = [1, 32], strides = [1, 1]} : vector<1x128xf32> to vector<1x32xf32>
    %8 = arith.addf %6, %7 : vector<1x32xf32>
    %9 = vector.extract_strided_slice %5 {offsets = [0, 64], sizes = [1, 32], strides = [1, 1]} : vector<1x128xf32> to vector<1x32xf32>
    %10 = arith.addf %8, %9 : vector<1x32xf32>
    %11 = vector.extract_strided_slice %5 {offsets = [0, 96], sizes = [1, 32], strides = [1, 1]} : vector<1x128xf32> to vector<1x32xf32>
    %12 = arith.addf %10, %11 : vector<1x32xf32>
    %cst_5 = arith.constant 3.906250e-03 : f32
    %13 = vector.broadcast %cst_5 : f32 to vector<1x32xf32>
    %14 = arith.mulf %12, %13 : vector<1x32xf32>
    %15 = tpu.concatenate %14, %14, %14, %14 in 1 : vector<1x32xf32>, vector<1x32xf32>, vector<1x32xf32>, vector<1x32xf32> -> vector<1x128xf32>
    %16 = vector.shape_cast %15 : vector<1x128xf32> to vector<1x1x128xf32>
    %17 = vector.broadcast %16 : vector<1x1x128xf32> to vector<1x64x128xf32>
    %18 = arith.subf %4, %17 : vector<1x64x128xf32>
    %19 = arith.mulf %18, %18 : vector<1x64x128xf32>
    %cst_6 = arith.constant dense<0.000000e+00> : vector<1x128xf32>
    %20 = vector.multi_reduction <add>, %19, %cst_6 [1] : vector<1x64x128xf32> to vector<1x128xf32>
    %21 = vector.extract_strided_slice %20 {offsets = [0, 0], sizes = [1, 32], strides = [1, 1]} : vector<1x128xf32> to vector<1x32xf32>
    %22 = vector.extract_strided_slice %20 {offsets = [0, 32], sizes = [1, 32], strides = [1, 1]} : vector<1x128xf32> to vector<1x32xf32>
    %23 = arith.addf %21, %22 : vector<1x32xf32>
    %24 = vector.extract_strided_slice %20 {offsets = [0, 64], sizes = [1, 32], strides = [1, 1]} : vector<1x128xf32> to vector<1x32xf32>
    %25 = arith.addf %23, %24 : vector<1x32xf32>
    %26 = vector.extract_strided_slice %20 {offsets = [0, 96], sizes = [1, 32], strides = [1, 1]} : vector<1x128xf32> to vector<1x32xf32>
    %27 = arith.addf %25, %26 : vector<1x32xf32>
    %cst_7 = arith.constant 3.906250e-03 : f32
    %28 = vector.broadcast %cst_7 : f32 to vector<1x32xf32>
    %29 = arith.mulf %27, %28 : vector<1x32xf32>
    %cst_8 = arith.constant 9.99999974E-6 : f32
    %30 = vector.broadcast %cst_8 : f32 to vector<1x32xf32>
    %31 = arith.addf %29, %30 : vector<1x32xf32>
    %32 = math.rsqrt %31 : vector<1x32xf32>
    %33 = tpu.concatenate %32, %32, %32, %32 in 1 : vector<1x32xf32>, vector<1x32xf32>, vector<1x32xf32>, vector<1x32xf32> -> vector<1x128xf32>
    %34 = vector.shape_cast %33 : vector<1x128xf32> to vector<1x1x128xf32>
    %35 = vector.broadcast %34 : vector<1x1x128xf32> to vector<1x64x128xf32>
    %36 = arith.mulf %18, %35 : vector<1x64x128xf32>
    %cst_9 = arith.constant 0.000000e+00 : f32
    %37 = vector.broadcast %cst_9 : f32 to vector<1x64x128xf32>
    %38 = arith.maximumf %36, %37 : vector<1x64x128xf32>
    %cst_10 = arith.constant dense<0.000000e+00> : vector<1x128xf32>
    %39 = vector.multi_reduction <add>, %38, %cst_10 [1] : vector<1x64x128xf32> to vector<1x128xf32>
    %40 = vector.extract_strided_slice %39 {offsets = [0, 0], sizes = [1, 32], strides = [1, 1]} : vector<1x128xf32> to vector<1x32xf32>
    %41 = vector.extract_strided_slice %39 {offsets = [0, 32], sizes = [1, 32], strides = [1, 1]} : vector<1x128xf32> to vector<1x32xf32>
    %42 = arith.addf %40, %41 : vector<1x32xf32>
    %43 = vector.extract_strided_slice %39 {offsets = [0, 64], sizes = [1, 32], strides = [1, 1]} : vector<1x128xf32> to vector<1x32xf32>
    %44 = arith.addf %42, %43 : vector<1x32xf32>
    %45 = vector.extract_strided_slice %39 {offsets = [0, 96], sizes = [1, 32], strides = [1, 1]} : vector<1x128xf32> to vector<1x32xf32>
    %46 = arith.addf %44, %45 : vector<1x32xf32>
    %cst_11 = arith.constant 3.906250e-03 : f32
    %47 = vector.broadcast %cst_11 : f32 to vector<1x32xf32>
    %48 = arith.mulf %46, %47 : vector<1x32xf32>
    %c0_12 = arith.constant 0 : index
    %c0_13 = arith.constant 0 : index
    %49 = vector.load %arg3[%c0_12, %c0_13] : memref<32x2xf32, #tpu.memory_space<vmem>>, vector<32x2xf32>
    %cst_14 = arith.constant dense<0.000000e+00> : vector<1x2xf32>
    %50 = tpu.matmul %48, %49, %cst_14 {dimension_numbers = #tpu.dot_dimension_numbers<[1], [0], [0], [1], [0, 0, 1, 1], [], []>} : vector<1x32xf32>, vector<32x2xf32>, vector<1x2xf32> -> vector<1x2xf32>
    %c0_15 = arith.constant 0 : index
    %c0_16 = arith.constant 0 : index
    %51 = vector.load %arg4[%c0_15, %c0_16] : memref<1x2xf32, #tpu.memory_space<vmem>>, vector<1x2xf32>
    %52 = arith.addf %50, %51 : vector<1x2xf32>
    %cst_17 = arith.constant 0.000000e+00 : f32
    %53 = vector.broadcast %cst_17 : f32 to vector<1x2xf32>
    %54 = arith.maximumf %52, %53 : vector<1x2xf32>
    %c0_18 = arith.constant 0 : index
    %c0_19 = arith.constant 0 : index
    %55 = vector.load %arg5[%c0_18, %c0_19] : memref<2x32xf32, #tpu.memory_space<vmem>>, vector<2x32xf32>
    %cst_20 = arith.constant dense<0.000000e+00> : vector<1x32xf32>
    %56 = tpu.matmul %54, %55, %cst_20 {dimension_numbers = #tpu.dot_dimension_numbers<[1], [0], [0], [1], [0, 0, 1, 1], [], []>} : vector<1x2xf32>, vector<2x32xf32>, vector<1x32xf32> -> vector<1x32xf32>
    %c0_21 = arith.constant 0 : index
    %c0_22 = arith.constant 0 : index
    %57 = vector.load %arg6[%c0_21, %c0_22] : memref<1x32xf32, #tpu.memory_space<vmem>>, vector<1x32xf32>
    %58 = arith.addf %56, %57 : vector<1x32xf32>
    %59 = arith.negf %58 : vector<1x32xf32>
    %60 = math.exp %59 : vector<1x32xf32>
    %cst_23 = arith.constant 1.000000e+00 : f32
    %61 = vector.broadcast %cst_23 : f32 to vector<1x32xf32>
    %62 = arith.addf %61, %60 : vector<1x32xf32>
    %63 = arith.divf %61, %62 : vector<1x32xf32>
    %64 = tpu.concatenate %63, %63, %63, %63 in 1 : vector<1x32xf32>, vector<1x32xf32>, vector<1x32xf32>, vector<1x32xf32> -> vector<1x128xf32>
    %65 = vector.shape_cast %64 : vector<1x128xf32> to vector<1x1x128xf32>
    %66 = vector.broadcast %65 : vector<1x1x128xf32> to vector<1x64x128xf32>
    %67 = arith.mulf %38, %66 : vector<1x64x128xf32>
    %c0_24 = arith.constant 0 : index
    %c0_25 = arith.constant 0 : index
    %c0_26 = arith.constant 0 : index
    %68 = vector.load %arg7[%c0_24, %c0_25, %c0_26] : memref<1x64x128xf32, #tpu.memory_space<vmem>>, vector<1x64x128xf32>
    tpu.vector_store %arg7[%c0_24, %c0_25, %c0_26], %67 {strides = array<i32>} : memref<1x64x128xf32, #tpu.memory_space<vmem>>, vector<1x64x128xf32>,
    return
  }
  func.func @transform_0(%arg0: i32) -> (i32, i32, i32) {
    %c0_i32 = arith.constant 0 : i32
    %c0_i32_0 = arith.constant 0 : i32
    %c0_i32_1 = arith.constant 0 : i32
    return %arg0, %c0_i32, %c0_i32_0 : i32, i32, i32
  }
  func.func @transform_1(%arg0: i32) -> (i32, i32) {
    %c0_i32 = arith.constant 0 : i32
    %c0_i32_0 = arith.constant 0 : i32
    %c0_i32_1 = arith.constant 0 : i32
    return %c0_i32, %c0_i32_0 : i32, i32
  }
  func.func @transform_2(%arg0: i32) -> (i32, i32) {
    %c0_i32 = arith.constant 0 : i32
    %c0_i32_0 = arith.constant 0 : i32
    %c0_i32_1 = arith.constant 0 : i32
    return %c0_i32, %c0_i32_0 : i32, i32
  }
  func.func @transform_3(%arg0: i32) -> (i32, i32) {
    %c0_i32 = arith.constant 0 : i32
    %c0_i32_0 = arith.constant 0 : i32
    %c0_i32_1 = arith.constant 0 : i32
    return %c0_i32, %c0_i32_0 : i32, i32
  }
  func.func @transform_4(%arg0: i32) -> (i32, i32) {
    %c0_i32 = arith.constant 0 : i32
    %c0_i32_0 = arith.constant 0 : i32
    %c0_i32_1 = arith.constant 0 : i32
    return %c0_i32, %c0_i32_0 : i32, i32
  }
  func.func @transform_5(%arg0: i32) -> (i32, i32) {
    %c0_i32 = arith.constant 0 : i32
    %c0_i32_0 = arith.constant 0 : i32
    %c0_i32_1 = arith.constant 0 : i32
    return %c0_i32, %c0_i32_0 : i32, i32
  }
  func.func @transform_6(%arg0: i32) -> (i32, i32, i32) {
    %c0_i32 = arith.constant 0 : i32
    %c0_i32_0 = arith.constant 0 : i32
    %c0_i32_1 = arith.constant 0 : i32
    return %arg0, %c0_i32, %c0_i32_0 : i32, i32, i32
  }
}

</mosaic_0001>

<llo_original>
// kernel: tpu_custom_call.1
$region0: #{tpu_custom_call.1}
  #allocation0 [shape = 'u32[]', space=smem, size = 0x4, offset = 0x4, fixed_abs, tag = 'smem constant byte address 0x4 - core index']
  #allocation1 [shape = 'u32[144,128]{1,0:T(1,128)}', space=vmem, size = 0x12000, scoped, tag = 'internal scratch']
  %s0 = inlined_call_operand.hbm [shape: bf16[2,64,128], index: 0, kind: input, shape index: {}]
  %s1 = inlined_call_operand.hbm [shape: bf16[128,128], index: 1, kind: input, shape index: {}]
  %s2 = inlined_call_operand.vmem [shape: f32[32,2], index: 2, kind: input, shape index: {}]
  %s3 = inlined_call_operand.vmem [shape: f32[1,2], index: 3, kind: input, shape index: {}]
  %s4 = inlined_call_operand.vmem [shape: f32[2,32], index: 4, kind: input, shape index: {}]
  %s5 = inlined_call_operand.vmem [shape: f32[1,32], index: 5, kind: input, shape index: {}]
  %s6 = inlined_call_operand.hbm [shape: f32[2,64,128], index: 6, kind: output, shape index: {}]
  %s7 = sld [smem:[#allocation0]]
  $region65: #{tpu_custom_call.1} parent=0
    _
  %s9 = ssub.s32 1, %s7
  %s10 = scalar_select 0, %s9, %s7
  $region1: #{tpu_custom_call.1} parent=0
    #allocation2 [shape = 'u8[32768]{0}', space=vmem, size = 0x8000, scoped, tag = 'input window, operand 0']
    #allocation3 [shape = 's32[2]{0}', space=sflag, size = 0x8, scoped, tag = 'scoped memory for tpu_custom_call.1']
    #allocation4 [shape = 's32[2]{0}', space=sflag, size = 0x8, scoped, tag = 'scoped memory for tpu_custom_call.1']
    #allocation5 [shape = 'u8[32768]{0}', space=vmem, size = 0x8000, scoped, tag = 'input window, operand 1, single buffered']
    #allocation6 [shape = 's32[1]{0}', space=sflag, size = 0x4, scoped, tag = 'scoped memory for tpu_custom_call.1']
    #allocation7 [shape = 'u8[65536]{0}', space=vmem, size = 0x10000, scoped, tag = 'output window, operand 0']
    %11 = vsyncpa [#allocation3], 0
    %s12 = scalar_lea.sflag [#allocation3], 1
    %13 = vsyncpa %s12, 0
    %14 = vsyncpa [#allocation6], 0
    %15 = vsyncpa [#allocation4], 0
    %s16 = scalar_lea.sflag [#allocation4], 1
    %17 = vsyncpa %s16, 0
    loop: start=0, step=1, limit=4
    $region2: #{tpu_custom_call.1} parent=1 // loop_pre_header
      _
    $region3: #{tpu_custom_call.1} parent=1 // loop_header
      %s19 = sphi 0, %s23
      %p20 = scmp.ge.s32.totalorder %s19, 4
      %s29 = sphi 0, %s31
      %s32 = sphi 0, %s29
      %s33 = sphi 0, %s32
      %s49 = sphi 0, %s33
      %s53 = sphi 0, %s53
      %s55 = sphi 0, %s53
      %s56 = sphi 0, %s55
      %s70 = sphi 0, %s56
      %s74 = sphi 0, %s74
      %s76 = sphi 0, %s74
      %s77 = sphi 0, %s76
      %s91 = sphi 0, %s77
      %s95 = sphi 0, %s95
      %s97 = sphi 0, %s95
      %s98 = sphi 0, %s97
      %s112 = sphi 0, %s98
      %s116 = sphi 0, %s116
      %s118 = sphi 0, %s116
      %s119 = sphi 0, %s118
      %s133 = sphi 0, %s119
      %s137 = sphi 0, %s137
      %s139 = sphi 0, %s137
      %s140 = sphi 0, %s139
      %s154 = sphi 0, %s140
      %s160 = sphi 0, %s162
      %s163 = sphi 0, %s160
      %s164 = sphi 0, %s163
      %s180 = sphi 0, %s164
    $region4: #{tpu_custom_call.1} parent=1 // loop_header_branch
      %22 = sbr.rel (%p20) target = $region8
    $region5: #{tpu_custom_call.1} parent=1 // loop_body
      %s24 = ssub.s32 %s19, 1
      %s25 = ssub.s32 %s19, 2
      %s26 = sadd.s32 %s19, 1
      %s27 = ssub.s32 %s19, %s26
      %p28 = scmp.eq.s32.totalorder %s27, 0
      %s30 = sadd.s32 %s29, 1
      %s31 = scalar_select %p28, %s29, %s30
      %p34 = pneg %p28
      %p35 = scmp.eq.s32.totalorder %s19, 1
      %p36 = por %p34, %p35
      %p37 = scmp.ne.s32.totalorder %s29, %s32
      %p38 = scmp.eq.s32.totalorder %s19, 0
      %p39 = por %p37, %p38
      %p40 = scmp.ne.s32.totalorder %s29, %s32
      %p41 = scmp.eq.s32.totalorder %s24, 1
      %p42 = por %p40, %p41
      %p43 = scmp.ne.s32.totalorder %s32, %s33
      %p44 = scmp.eq.s32.totalorder %s24, 0
      %p45 = por %p43, %p44
      %p46 = scmp.ne.s32.totalorder %s32, %s33
      %p47 = scmp.eq.s32.totalorder %s25, 1
      %p48 = por %p46, %p47
      %p50 = scmp.ne.s32.totalorder %s33, %s49
      %p51 = scmp.eq.s32.totalorder %s25, 0
      %p52 = por %p50, %p51
      %s54 = sadd.s32 %s53, 1
      %p57 = scmp.eq.s32.totalorder %s19, 1
      %p58 = scmp.ne.s32.totalorder %s53, %s55
      %p59 = scmp.eq.s32.totalorder %s19, 0
      %p60 = por %p58, %p59
      %p61 = scmp.ne.s32.totalorder %s53, %s55
      %p62 = scmp.eq.s32.totalorder %s24, 1
      %p63 = por %p61, %p62
      %p64 = scmp.ne.s32.totalorder %s55, %s56
      %p65 = scmp.eq.s32.totalorder %s24, 0
      %p66 = por %p64, %p65
      %p67 = scmp.ne.s32.totalorder %s55, %s56
      %p68 = scmp.eq.s32.totalorder %s25, 1
      %p69 = por %p67, %p68
      %p71 = scmp.ne.s32.totalorder %s56, %s70
      %p72 = scmp.eq.s32.totalorder %s25, 0
      %p73 = por %p71, %p72
      %s75 = sadd.s32 %s74, 1
      %p78 = scmp.eq.s32.totalorder %s19, 1
      %p79 = scmp.ne.s32.totalorder %s74, %s76
      %p80 = scmp.eq.s32.totalorder %s19, 0
      %p81 = por %p79, %p80
      %p82 = scmp.ne.s32.totalorder %s74, %s76
      %p83 = scmp.eq.s32.totalorder %s24, 1
      %p84 = por %p82, %p83
      %p85 = scmp.ne.s32.totalorder %s76, %s77
      %p86 = scmp.eq.s32.totalorder %s24, 0
      %p87 = por %p85, %p86
      %p88 = scmp.ne.s32.totalorder %s76, %s77
      %p89 = scmp.eq.s32.totalorder %s25, 1
      %p90 = por %p88, %p89
      %p92 = scmp.ne.s32.totalorder %s77, %s91
      %p93 = scmp.eq.s32.totalorder %s25, 0
      %p94 = por %p92, %p93
      %s96 = sadd.s32 %s95, 1
      %p99 = scmp.eq.s32.totalorder %s19, 1
      %p100 = scmp.ne.s32.totalorder %s95, %s97
      %p101 = scmp.eq.s32.totalorder %s19, 0
      %p102 = por %p100, %p101
      %p103 = scmp.ne.s32.totalorder %s95, %s97
      %p104 = scmp.eq.s32.totalorder %s24, 1
      %p105 = por %p103, %p104
      %p106 = scmp.ne.s32.totalorder %s97, %s98
      %p107 = scmp.eq.s32.totalorder %s24, 0
      %p108 = por %p106, %p107
      %p109 = scmp.ne.s32.totalorder %s97, %s98
      %p110 = scmp.eq.s32.totalorder %s25, 1
      %p111 = por %p109, %p110
      %p113 = scmp.ne.s32.totalorder %s98, %s112
      %p114 = scmp.eq.s32.totalorder %s25, 0
      %p115 = por %p113, %p114
      %s117 = sadd.s32 %s116, 1
      %p120 = scmp.eq.s32.totalorder %s19, 1
      %p121 = scmp.ne.s32.totalorder %s116, %s118
      %p122 = scmp.eq.s32.totalorder %s19, 0
      %p123 = por %p121, %p122
      %p124 = scmp.ne.s32.totalorder %s116, %s118
      %p125 = scmp.eq.s32.totalorder %s24, 1
      %p126 = por %p124, %p125
      %p127 = scmp.ne.s32.totalorder %s118, %s119
      %p128 = scmp.eq.s32.totalorder %s24, 0
      %p129 = por %p127, %p128
      %p130 = scmp.ne.s32.totalorder %s118, %s119
      %p131 = scmp.eq.s32.totalorder %s25, 1
      %p132 = por %p130, %p131
      %p134 = scmp.ne.s32.totalorder %s119, %s133
      %p135 = scmp.eq.s32.totalorder %s25, 0
      %p136 = por %p134, %p135
      %s138 = sadd.s32 %s137, 1
      %p141 = scmp.eq.s32.totalorder %s19, 1
      %p142 = scmp.ne.s32.totalorder %s137, %s139
      %p143 = scmp.eq.s32.totalorder %s19, 0
      %p144 = por %p142, %p143
      %p145 = scmp.ne.s32.totalorder %s137, %s139
      %p146 = scmp.eq.s32.totalorder %s24, 1
      %p147 = por %p145, %p146
      %p148 = scmp.ne.s32.totalorder %s139, %s140
      %p149 = scmp.eq.s32.totalorder %s24, 0
      %p150 = por %p148, %p149
      %p151 = scmp.ne.s32.totalorder %s139, %s140
      %p152 = scmp.eq.s32.totalorder %s25, 1
      %p153 = por %p151, %p152
      %p155 = scmp.ne.s32.totalorder %s140, %s154
      %p156 = scmp.eq.s32.totalorder %s25, 0
      %p157 = por %p155, %p156
      %s158 = ssub.s32 %s19, %s26
      %p159 = scmp.eq.s32.totalorder %s158, 0
      %s161 = sadd.s32 %s160, 1
      %s162 = scalar_select %p159, %s160, %s161
      %p165 = pneg %p159
      %p166 = scmp.eq.s32.totalorder %s19, 1
      %p167 = por %p165, %p166
      %p168 = scmp.ne.s32.totalorder %s160, %s163
      %p169 = scmp.eq.s32.totalorder %s19, 0
      %p170 = por %p168, %p169
      %p171 = scmp.ne.s32.totalorder %s160, %s163
      %p172 = scmp.eq.s32.totalorder %s24, 1
      %p173 = por %p171, %p172
      %p174 = scmp.ne.s32.totalorder %s163, %s164
      %p175 = scmp.eq.s32.totalorder %s24, 0
      %p176 = por %p174, %p175
      %p177 = scmp.ne.s32.totalorder %s163, %s164
      %p178 = scmp.eq.s32.totalorder %s25, 1
      %p179 = por %p177, %p178
      %p181 = scmp.ne.s32.totalorder %s164, %s180
      %p182 = scmp.eq.s32.totalorder %s25, 0
      %p183 = por %p181, %p182
      %p184 = scmp.le.s32.totalorder 1, %s19
      %p185 = scmp.lt.s32.totalorder %s19, 3
      %p186 = pnand %p184, %p185
      %p187 = pneg %p186
      // Predicated region
      $region9: #{tpu_custom_call.1} parent=5 // pred_check
        _
      $region10: #{tpu_custom_call.1} parent=5 // pred_check_branch
        %189 = sbr.rel (%p186) target = $region12
      $region11: #{tpu_custom_call.1} parent=5 // pred_region
        %s190 = ssub.s32 %s19, 1
        // Predicated region
        $region13: #{tpu_custom_call.1} parent=11 // pred_check
          %p191 = pneg %p66
        $region14: #{tpu_custom_call.1} parent=11 // pred_check_branch
          %193 = sbr.rel (%p191) target = $region16
        $region15: #{tpu_custom_call.1} parent=11 // pred_region
          %s195 = ssub.s32 1024, 1024
          %196 = vsyncadd [#allocation6], %s195
          %s197 = sshll.u32 [#allocation5], 4
          %s198 = int_to_ptr.vmem [resolvable:$true] %s197
          %203 = dma.hbm_to_vmem [thread:$0]  %s1, 1024, %s198, [#allocation6], 64, 64, 4
        $region16: #{tpu_custom_call.1} parent=11 // pred_fallthru
          _
        // Predicated region
        $region17: #{tpu_custom_call.1} parent=11 // pred_check
          %p204 = pneg %p87
        $region18: #{tpu_custom_call.1} parent=11 // pred_check_branch
          %206 = sbr.rel (%p204) target = $region20
        $region19: #{tpu_custom_call.1} parent=11 // pred_region
          _
        $region20: #{tpu_custom_call.1} parent=11 // pred_fallthru
          _
        // Predicated region
        $region21: #{tpu_custom_call.1} parent=11 // pred_check
          %p207 = pneg %p108
        $region22: #{tpu_custom_call.1} parent=11 // pred_check_branch
          %209 = sbr.rel (%p207) target = $region24
        $region23: #{tpu_custom_call.1} parent=11 // pred_region
          _
        $region24: #{tpu_custom_call.1} parent=11 // pred_fallthru
          _
        // Predicated region
        $region25: #{tpu_custom_call.1} parent=11 // pred_check
          %p210 = pneg %p129
        $region26: #{tpu_custom_call.1} parent=11 // pred_check_branch
          %212 = sbr.rel (%p210) target = $region28
        $region27: #{tpu_custom_call.1} parent=11 // pred_region
          _
        $region28: #{tpu_custom_call.1} parent=11 // pred_fallthru
          _
        // Predicated region
        $region29: #{tpu_custom_call.1} parent=11 // pred_check
          %p213 = pneg %p150
        $region30: #{tpu_custom_call.1} parent=11 // pred_check_branch
          %215 = sbr.rel (%p213) target = $region32
        $region31: #{tpu_custom_call.1} parent=11 // pred_region
          _
        $region32: #{tpu_custom_call.1} parent=11 // pred_fallthru
          _
      $region12: #{tpu_custom_call.1} parent=5 // pred_fallthru
        _
      %p216 = scmp.lt.s32.totalorder %s19, 2
      // Predicated region
      $region33: #{tpu_custom_call.1} parent=5 // pred_check
        %p217 = pneg %p216
      $region34: #{tpu_custom_call.1} parent=5 // pred_check_branch
        %219 = sbr.rel (%p217) target = $region36
      $region35: #{tpu_custom_call.1} parent=5 // pred_region
        // Predicated region
        $region37: #{tpu_custom_call.1} parent=35 // pred_check
          %p220 = pneg %p39
        $region38: #{tpu_custom_call.1} parent=35 // pred_check_branch
          %222 = sbr.rel (%p220) target = $region40
        $region39: #{tpu_custom_call.1} parent=35 // pred_region
          %s223 = sand.u32 %s29, 1
          %s224 = scalar_lea.sflag [#allocation3], %s223
          %s225 = sand.u32 %s29, 1
          %s226 = smul.addr %s225, 32
          %s227 = scalar_lea.vmem [#allocation2], %s226
          %s229 = ssub.s32 512, 512
          %230 = vsyncadd %s224, %s229
          %s231 = smul.addr %s19, 8
          %s232 = smul.addr %s231, 64
          %s233 = scalar_lea.hbm %s0, %s232
          %s234 = sshll.u32 %s227, 4
          %s235 = int_to_ptr.vmem [resolvable:$true] %s234
          %240 = dma.hbm_to_vmem [thread:$0]  %s233, 512, %s235, %s224, 64, 64, 4
        $region40: #{tpu_custom_call.1} parent=35 // pred_fallthru
          _
      $region36: #{tpu_custom_call.1} parent=5 // pred_fallthru
        _
      %p241 = scmp.le.s32.totalorder 1, %s19
      %p242 = scmp.lt.s32.totalorder %s19, 3
      %p243 = pnand %p241, %p242
      %p244 = pneg %p243
      // Predicated region
      $region41: #{tpu_custom_call.1} parent=5 // pred_check
        _
      $region42: #{tpu_custom_call.1} parent=5 // pred_check_branch
        %246 = sbr.rel (%p243) target = $region44
      $region43: #{tpu_custom_call.1} parent=5 // pred_region
        %s247 = ssub.s32 %s19, 1
        %s248 = sand.u32 %s32, 1
        %s249 = scalar_lea.sflag [#allocation3], %s248
        %s250 = sand.u32 %s32, 1
        %s251 = smul.addr %s250, 32
        %s252 = scalar_lea.vmem [#allocation2], %s251
        // Predicated region
        $region45: #{tpu_custom_call.1} parent=43 // pred_check
          %p253 = pneg %p45
        $region46: #{tpu_custom_call.1} parent=43 // pred_check_branch
          %255 = sbr.rel (%p253) target = $region48
        $region47: #{tpu_custom_call.1} parent=43 // pred_region
          %256 = dma.done %s249, 512
        $region48: #{tpu_custom_call.1} parent=43 // pred_fallthru
          _
        // Predicated region
        $region49: #{tpu_custom_call.1} parent=43 // pred_check
          %p257 = pneg %p66
        $region50: #{tpu_custom_call.1} parent=43 // pred_check_branch
          %259 = sbr.rel (%p257) target = $region52
        $region51: #{tpu_custom_call.1} parent=43 // pred_region
          %260 = dma.done [#allocation6], 1024
        $region52: #{tpu_custom_call.1} parent=43 // pred_fallthru
          _
        %s261 = sand.u32 %s32, 1
        %s262 = scalar_lea.sflag [#allocation3], %s261
        %s263 = sand.u32 %s32, 1
        %s264 = smul.addr %s263, 32
        %s265 = scalar_lea.vmem [#allocation2], %s264
        %p266 = pneg %p45
        %p267 = pneg %p42
        %p268 = pneg %p66
        %p269 = pneg %p63
        %p270 = pneg %p87
        %p271 = pneg %p84
        %p272 = pneg %p108
        %p273 = pneg %p105
        %p274 = pneg %p129
        %p275 = pneg %p126
        %p276 = pneg %p150
        %p277 = pneg %p147
        %p278 = pneg %p176
        %p279 = pneg %p173
        %s280 = sand.u32 %s163, 1
        %s281 = scalar_lea.sflag [#allocation4], %s280
        %s282 = sand.u32 %s163, 1
        %s283 = smul.addr %s282, 64
        %s284 = scalar_lea.vmem [#allocation7], %s283
        %v286 = vld [vmem:[%s252] sm:$0xf]
        %v287 = vld [vmem:[%s252 + $0x4] sm:$0xf]
        %v288 = vld [vmem:[%s252 + $0x8] sm:$0xf]
        %v289 = vld [vmem:[%s252 + $0xc] sm:$0xf]
        %v290 = vld [vmem:[%s252 + $0x10] sm:$0xf]
        %v291 = vld [vmem:[%s252 + $0x14] sm:$0xf]
        %v292 = vld [vmem:[%s252 + $0x18] sm:$0xf]
        %v293 = vld [vmem:[%s252 + $0x1c] sm:$0xf]
        %v294 = vld [vmem:[#allocation5] sm:$0xf]
        %v295 = vld [vmem:[#allocation5 + $0x4] sm:$0xf]
        %v296 = vld [vmem:[#allocation5 + $0x8] sm:$0xf]
        %v297 = vld [vmem:[#allocation5 + $0xc] sm:$0xf]
        %v298 = vld [vmem:[#allocation5 + $0x10] sm:$0xf]
        %v299 = vld [vmem:[#allocation5 + $0x14] sm:$0xf]
        %v300 = vld [vmem:[#allocation5 + $0x18] sm:$0xf]
        %v301 = vld [vmem:[#allocation5 + $0x1c] sm:$0xf]
        %v302 = vld [vmem:[#allocation5 + $0x20] sm:$0xf]
        %v303 = vld [vmem:[#allocation5 + $0x24] sm:$0xf]
        %v304 = vld [vmem:[#allocation5 + $0x28] sm:$0xf]
        %v305 = vld [vmem:[#allocation5 + $0x2c] sm:$0xf]
        %v306 = vld [vmem:[#allocation5 + $0x30] sm:$0xf]
        %v307 = vld [vmem:[#allocation5 + $0x34] sm:$0xf]
        %v308 = vld [vmem:[#allocation5 + $0x38] sm:$0xf]
        %v309 = vld [vmem:[#allocation5 + $0x3c] sm:$0xf]
        %v318 = vunpack.c.l.b16 %v286
        %v319 = vunpack.c.l.b16 %v287
        %v320 = vunpack.c.l.b16 %v288
        %v321 = vunpack.c.l.b16 %v289
        %v322 = vunpack.c.l.b16 %v290
        %v323 = vunpack.c.l.b16 %v291
        %v324 = vunpack.c.l.b16 %v292
        %v325 = vunpack.c.l.b16 %v293
        %v326 = vpack.c.b16 %v319, %v318
        %v327 = vpack.c.b16 %v321, %v320
        %v328 = vpack.c.b16 %v323, %v322
        %v329 = vpack.c.b16 %v325, %v324
        %v350 = vunpack.c.l.b16 %v294
        %v351 = vunpack.c.l.b16 %v295
        %v352 = vunpack.c.l.b16 %v296
        %v353 = vunpack.c.l.b16 %v297
        %v354 = vunpack.c.l.b16 %v298
        %v355 = vunpack.c.l.b16 %v299
        %v356 = vunpack.c.l.b16 %v300
        %v357 = vunpack.c.l.b16 %v301
        %v358 = vunpack.c.l.b16 %v302
        %v359 = vunpack.c.l.b16 %v303
        %v360 = vunpack.c.l.b16 %v304
        %v361 = vunpack.c.l.b16 %v305
        %v362 = vunpack.c.l.b16 %v306
        %v363 = vunpack.c.l.b16 %v307
        %v364 = vunpack.c.l.b16 %v308
        %v365 = vunpack.c.l.b16 %v309
        %v366 = vpack.c.b16 %v351, %v350
        %v367 = vpack.c.b16 %v353, %v352
        %v368 = vpack.c.b16 %v355, %v354
        %v369 = vpack.c.b16 %v357, %v356
        %v370 = vpack.c.b16 %v359, %v358
        %v371 = vpack.c.b16 %v361, %v360
        %v372 = vpack.c.b16 %v363, %v362
        %v373 = vpack.c.b16 %v365, %v364
        %382 = vmatprep.subr.bf16.mxu0 0
        %383 = vmatpush1.bf16.msra.mxu0 %v373
        %384 = vmatprep.subr.bf16.mxu0 0
        %385 = vmatpush1.bf16.msra.mxu0 %v372
        %386 = vmatprep.subr.bf16.mxu0 0
        %387 = vmatpush1.bf16.msra.mxu0 %v371
        %388 = vmatprep.subr.bf16.mxu0 0
        %389 = vmatpush1.bf16.msra.mxu0 %v370
        %390 = vmatprep.subr.bf16.mxu0 0
        %391 = vmatpush1.bf16.msra.mxu0 %v369
        %392 = vmatprep.subr.bf16.mxu0 0
        %393 = vmatpush1.bf16.msra.mxu0 %v368
        %394 = vmatprep.subr.bf16.mxu0 0
        %395 = vmatpush1.bf16.msra.mxu0 %v367
        %396 = vmatprep.subr.bf16.mxu0 0
        %397 = vmatpush1.bf16.msra.mxu0 %v366
        %398 = vmatprep.subr.bf16.mxu0 0
        %399 = vmatpush2.bf16.msra.mxu0 0
        %400 = vmatprep.subr.bf16.mxu0 0
        %401 = vmatpush2.bf16.msra.mxu0 0
        %402 = vmatprep.subr.bf16.mxu0 0
        %403 = vmatpush2.bf16.msra.mxu0 0
        %404 = vmatprep.subr.bf16.mxu0 0
        %405 = vmatpush2.bf16.msra.mxu0 0
        %406 = vmatprep.subr.bf16.mxu0 0
        %407 = vmatpush2.bf16.msra.mxu0 0
        %408 = vmatprep.subr.bf16.mxu0 0
        %409 = vmatpush2.bf16.msra.mxu0 0
        %410 = vmatprep.subr.bf16.mxu0 0
        %411 = vmatpush2.bf16.msra.mxu0 0
        %412 = vmatprep.subr.bf16.mxu0 0
        %413 = vmatpush2.bf16.msra.mxu0 0
        %414 = vmatprep.mubr.bf16.mxu0 0
        %415 = vmatmul.mubr.bf16.gmra.mxu0 %v326
        %v416 = vpop.f32.mrf.mxu0
        %v417 = vadd.f32 0.0, %v416
        %v418 = vpop.f32.mrf.mxu0
        %v419 = vpop.f32.mrf.mxu0
        %v420 = vadd.f32 0.0, %v419
        %v421 = vpop.f32.mrf.mxu0
        %422 = vmatprep.mubr.bf16.mxu0 0
        %423 = vmatmul.mubr.bf16.gmra.mxu0 %v327
        %v424 = vpop.f32.mrf.mxu0
        %v425 = vadd.f32 0.0, %v424
        %v426 = vpop.f32.mrf.mxu0
        %v427 = vpop.f32.mrf.mxu0
        %v428 = vadd.f32 0.0, %v427
        %v429 = vpop.f32.mrf.mxu0
        %430 = vmatprep.mubr.bf16.mxu0 0
        %431 = vmatmul.mubr.bf16.gmra.mxu0 %v328
        %v432 = vpop.f32.mrf.mxu0
        %v433 = vadd.f32 0.0, %v432
        %v434 = vpop.f32.mrf.mxu0
        %v435 = vpop.f32.mrf.mxu0
        %v436 = vadd.f32 0.0, %v435
        %v437 = vpop.f32.mrf.mxu0
        %438 = vmatprep.mubr.bf16.mxu0 0
        %439 = vmatmul.mubr.bf16.gmra.mxu0 %v329
        %v440 = vpop.f32.mrf.mxu0
        %v441 = vadd.f32 0.0, %v440
        %v442 = vpop.f32.mrf.mxu0
        %v443 = vpop.f32.mrf.mxu0
        %v444 = vadd.f32 0.0, %v443
        %v445 = vpop.f32.mrf.mxu0
        %446 = vdwg.mxu0
        %v447 = vadd.f32 %v417, %v420
        %v448 = vadd.f32 %v447, %v425
        %v449 = vadd.f32 %v448, %v428
        %v450 = vadd.f32 %v449, %v433
        %v451 = vadd.f32 %v450, %v436
        %v452 = vadd.f32 %v451, %v441
        %v453 = vadd.f32 %v452, %v444
        %v454 = vrot.slane %v453, 4
        %v455 = vadd.f32 %v453, %v454
        %v456 = vrot.slane %v455, 2
        %v457 = vadd.f32 %v455, %v456
        %v458 = vrot.slane %v457, 1
        %v459 = vadd.f32 %v457, %v458
        %461 = vrot.lane.b32.xlu0 %v459, 96
        %v462 = vpop.permute.xlu0 %461
        %v464 = vadd.f32 %v459, %v462
        %465 = vrot.lane.b32.xlu0 %v459, 64
        %v466 = vpop.permute.xlu0 %465
        %v468 = vadd.f32 %v464, %v466
        %469 = vrot.lane.b32.xlu0 %v459, 32
        %v470 = vpop.permute.xlu0 %469
        %v472 = vadd.f32 %v468, %v470
        %v473 = vmul.f32 %v472, 0.00390625
        %475 = vrot.lane.b32.xlu0 %v473, 32
        %v476 = vpop.permute.xlu0 %475
        %478 = vrot.lane.b32.xlu0 %v473, 64
        %v479 = vpop.permute.xlu0 %478
        %481 = vrot.lane.b32.xlu0 %v473, 96
        %v482 = vpop.permute.xlu0 %481
        %vm484 = vcmask 261120
        %v485 = vsel %vm484, %v473, %v476
        %vm486 = vcmask 523264
        %v487 = vsel %vm486, %v485, %v479
        %vm488 = vcmask 785408
        %v489 = vsel %vm488, %v487, %v482
        %v490 = vlaneseq
        %v491 = vshrl.u32 %v490, 7
        %v492 = vsub.s32 0, %v491
        %v493 = vrot.slane %v489, %v492
        %v494 = vsub.f32 %v417, %v493
        %v495 = vsub.f32 %v420, %v493
        %v496 = vsub.f32 %v425, %v493
        %v497 = vsub.f32 %v428, %v493
        %v498 = vsub.f32 %v433, %v493
        %v499 = vsub.f32 %v436, %v493
        %v500 = vsub.f32 %v441, %v493
        %v501 = vsub.f32 %v444, %v493
        %v502 = vmul.f32 %v494, %v494
        %v503 = vmul.f32 %v495, %v495
        %v504 = vmul.f32 %v496, %v496
        %v505 = vmul.f32 %v497, %v497
        %v506 = vmul.f32 %v498, %v498
        %v507 = vmul.f32 %v499, %v499
        %v508 = vmul.f32 %v500, %v500
        %v509 = vmul.f32 %v501, %v501
        %v510 = vadd.f32 %v502, %v503
        %v511 = vadd.f32 %v510, %v504
        %v512 = vadd.f32 %v511, %v505
        %v513 = vadd.f32 %v512, %v506
        %v514 = vadd.f32 %v513, %v507
        %v515 = vadd.f32 %v514, %v508
        %v516 = vadd.f32 %v515, %v509
        %v517 = vrot.slane %v516, 4
        %v518 = vadd.f32 %v516, %v517
        %v519 = vrot.slane %v518, 2
        %v520 = vadd.f32 %v518, %v519
        %v521 = vrot.slane %v520, 1
        %v522 = vadd.f32 %v520, %v521
        %524 = vrot.lane.b32.xlu0 %v522, 96
        %v525 = vpop.permute.xlu0 %524
        %v527 = vadd.f32 %v522, %v525
        %528 = vrot.lane.b32.xlu0 %v522, 64
        %v529 = vpop.permute.xlu0 %528
        %v531 = vadd.f32 %v527, %v529
        %532 = vrot.lane.b32.xlu0 %v522, 32
        %v533 = vpop.permute.xlu0 %532
        %v535 = vadd.f32 %v531, %v533
        %v536 = vmul.f32 %v535, 0.00390625
        %v537 = vadd.f32 %v536, 1e-05
        %v538 = vrsqrt.pop %v537
        %540 = vrot.lane.b32.xlu0 %v538, 32
        %v541 = vpop.permute.xlu0 %540
        %543 = vrot.lane.b32.xlu0 %v538, 64
        %v544 = vpop.permute.xlu0 %543
        %546 = vrot.lane.b32.xlu0 %v538, 96
        %v547 = vpop.permute.xlu0 %546
        %v549 = vsel %vm484, %v538, %v541
        %v550 = vsel %vm486, %v549, %v544
        %v551 = vsel %vm488, %v550, %v547
        %v552 = vlaneseq
        %v553 = vshrl.u32 %v552, 7
        %v554 = vsub.s32 0, %v553
        %v555 = vrot.slane %v551, %v554
        %v556 = vmul.f32 %v494, %v555
        %v557 = vmul.f32 %v495, %v555
        %v558 = vmul.f32 %v496, %v555
        %v559 = vmul.f32 %v497, %v555
        %v560 = vmul.f32 %v498, %v555
        %v561 = vmul.f32 %v499, %v555
        %v562 = vmul.f32 %v500, %v555
        %v563 = vmul.f32 %v501, %v555
        %v564 = vmax.f32 %v556, 0.0
        %v565 = vmax.f32 %v557, 0.0
        %v566 = vmax.f32 %v558, 0.0
        %v567 = vmax.f32 %v559, 0.0
        %v568 = vmax.f32 %v560, 0.0
        %v569 = vmax.f32 %v561, 0.0
        %v570 = vmax.f32 %v562, 0.0
        %v571 = vmax.f32 %v563, 0.0
        %v572 = vadd.f32 %v564, %v565
        %v573 = vadd.f32 %v572, %v566
        %v574 = vadd.f32 %v573, %v567
        %v575 = vadd.f32 %v574, %v568
        %v576 = vadd.f32 %v575, %v569
        %v577 = vadd.f32 %v576, %v570
        %v578 = vadd.f32 %v577, %v571
        %v579 = vrot.slane %v578, 4
        %v580 = vadd.f32 %v578, %v579
        %v581 = vrot.slane %v580, 2
        %v582 = vadd.f32 %v580, %v581
        %v583 = vrot.slane %v582, 1
        %v584 = vadd.f32 %v582, %v583
        %586 = vrot.lane.b32.xlu0 %v584, 96
        %v587 = vpop.permute.xlu0 %586
        %v589 = vadd.f32 %v584, %v587
        %590 = vrot.lane.b32.xlu0 %v584, 64
        %v591 = vpop.permute.xlu0 %590
        %v593 = vadd.f32 %v589, %v591
        %594 = vrot.lane.b32.xlu0 %v584, 32
        %v595 = vpop.permute.xlu0 %594
        %v597 = vadd.f32 %v593, %v595
        %v598 = vmul.f32 %v597, 0.00390625
        %v599 = vld [vmem:[%s2] sm:$0xff]
        %v600 = vld [vmem:[%s2 + $0x8] sm:$0xff]
        %v601 = vld [vmem:[%s2 + $0x10] sm:$0xff]
        %v602 = vld [vmem:[%s2 + $0x18] sm:$0xff]
        %v603 = vld [vmem:[%s3] sm:$0x1]
        %v605 = vsel %vm484, %v598, 0
        %607 = vmatprep.subr.mxu0 0.0
        %608 = vmatpush1.msra.mxu0 0.0
        %609 = vmatprep.subr.mxu0 0.0
        %610 = vmatpush1.msra.mxu0 0.0
        %611 = vmatprep.subr.mxu0 0.0
        %612 = vmatpush1.msra.mxu0 0.0
        %613 = vmatprep.subr.mxu0 0.0
        %614 = vmatpush1.msra.mxu0 0.0
        %615 = vmatprep.subr.mxu0 0.0
        %616 = vmatpush1.msra.mxu0 0.0
        %617 = vmatprep.subr.mxu0 0.0
        %618 = vmatpush1.msra.mxu0 0.0
        %619 = vmatprep.subr.mxu0 0.0
        %620 = vmatpush1.msra.mxu0 0.0
        %621 = vmatprep.subr.mxu0 0.0
        %622 = vmatpush1.msra.mxu0 0.0
        %623 = vmatprep.subr.mxu0 0.0
        %624 = vmatpush1.msra.mxu0 0.0
        %625 = vmatprep.subr.mxu0 0.0
        %626 = vmatpush1.msra.mxu0 0.0
        %627 = vmatprep.subr.mxu0 0.0
        %628 = vmatpush1.msra.mxu0 0.0
        %629 = vmatprep.subr.mxu0 0.0
        %630 = vmatpush1.msra.mxu0 0.0
        %631 = vmatprep.subr.mxu0 0.0
        %632 = vmatpush1.msra.mxu0 %v602
        %633 = vmatprep.subr.mxu0 0.0
        %634 = vmatpush1.msra.mxu0 %v601
        %635 = vmatprep.subr.mxu0 0.0
        %636 = vmatpush1.msra.mxu0 %v600
        %637 = vmatprep.subr.mxu0 0.0
        %638 = vmatpush1.msra.mxu0 %v599
        %639 = vmatprep.subr.mxu0 0.0
        %640 = vmatpush2.msra.mxu0 0.0
        %641 = vmatprep.subr.mxu0 0.0
        %642 = vmatpush2.msra.mxu0 0.0
        %643 = vmatprep.subr.mxu0 0.0
        %644 = vmatpush2.msra.mxu0 0.0
        %645 = vmatprep.subr.mxu0 0.0
        %646 = vmatpush2.msra.mxu0 0.0
        %647 = vmatprep.subr.mxu0 0.0
        %648 = vmatpush2.msra.mxu0 0.0
        %649 = vmatprep.subr.mxu0 0.0
        %650 = vmatpush2.msra.mxu0 0.0
        %651 = vmatprep.subr.mxu0 0.0
        %652 = vmatpush2.msra.mxu0 0.0
        %653 = vmatprep.subr.mxu0 0.0
        %654 = vmatpush2.msra.mxu0 0.0
        %655 = vmatprep.subr.mxu0 0.0
        %656 = vmatpush2.msra.mxu0 0.0
        %657 = vmatprep.subr.mxu0 0.0
        %658 = vmatpush2.msra.mxu0 0.0
        %659 = vmatprep.subr.mxu0 0.0
        %660 = vmatpush2.msra.mxu0 0.0
        %661 = vmatprep.subr.mxu0 0.0
        %662 = vmatpush2.msra.mxu0 0.0
        %663 = vmatprep.subr.mxu0 0.0
        %664 = vmatpush2.msra.mxu0 0.0
        %665 = vmatprep.subr.mxu0 0.0
        %666 = vmatpush2.msra.mxu0 0.0
        %667 = vmatprep.subr.mxu0 0.0
        %668 = vmatpush2.msra.mxu0 0.0
        %669 = vmatprep.subr.mxu0 0.0
        %670 = vmatpush2.msra.mxu0 0.0
        %671 = vmatprep.mubr.f32.mxu0 0.0
        %672 = vmatmul.mubr.f32.gmra.mxu0 %v605
        %v673 = vpop.f32.mrf.mxu0
        %v674 = vadd.f32 %v603, %v673
        %v675 = vpop.f32.mrf.mxu0
        %676 = vdwg.mxu0
        %v677 = vmax.f32 %v674, 0.0
        %v678 = vld [vmem:[%s4] sm:$0x3]
        %v679 = vld [vmem:[%s5] sm:$0x1]
        %vm680 = vcmask 15360
        %v682 = vsel %vm680, %v677, 0
        %vm684 = vcmask 1041408
        %v686 = vsel %vm684, %v678, 0
        %688 = vmatprep.subr.mxu0 0.0
        %689 = vmatpush1.msra.mxu0 0.0
        %690 = vmatprep.subr.mxu0 0.0
        %691 = vmatpush1.msra.mxu0 0.0
        %692 = vmatprep.subr.mxu0 0.0
        %693 = vmatpush1.msra.mxu0 0.0
        %694 = vmatprep.subr.mxu0 0.0
        %695 = vmatpush1.msra.mxu0 0.0
        %696 = vmatprep.subr.mxu0 0.0
        %697 = vmatpush1.msra.mxu0 0.0
        %698 = vmatprep.subr.mxu0 0.0
        %699 = vmatpush1.msra.mxu0 0.0
        %700 = vmatprep.subr.mxu0 0.0
        %701 = vmatpush1.msra.mxu0 0.0
        %702 = vmatprep.subr.mxu0 0.0
        %703 = vmatpush1.msra.mxu0 0.0
        %704 = vmatprep.subr.mxu0 0.0
        %705 = vmatpush1.msra.mxu0 0.0
        %706 = vmatprep.subr.mxu0 0.0
        %707 = vmatpush1.msra.mxu0 0.0
        %708 = vmatprep.subr.mxu0 0.0
        %709 = vmatpush1.msra.mxu0 0.0
        %710 = vmatprep.subr.mxu0 0.0
        %711 = vmatpush1.msra.mxu0 0.0
        %712 = vmatprep.subr.mxu0 0.0
        %713 = vmatpush1.msra.mxu0 0.0
        %714 = vmatprep.subr.mxu0 0.0
        %715 = vmatpush1.msra.mxu0 0.0
        %716 = vmatprep.subr.mxu0 0.0
        %717 = vmatpush1.msra.mxu0 0.0
        %718 = vmatprep.subr.mxu0 0.0
        %719 = vmatpush1.msra.mxu0 %v686
        %720 = vmatprep.subr.mxu0 0.0
        %721 = vmatpush2.msra.mxu0 0.0
        %722 = vmatprep.subr.mxu0 0.0
        %723 = vmatpush2.msra.mxu0 0.0
        %724 = vmatprep.subr.mxu0 0.0
        %725 = vmatpush2.msra.mxu0 0.0
        %726 = vmatprep.subr.mxu0 0.0
        %727 = vmatpush2.msra.mxu0 0.0
        %728 = vmatprep.subr.mxu0 0.0
        %729 = vmatpush2.msra.mxu0 0.0
        %730 = vmatprep.subr.mxu0 0.0
        %731 = vmatpush2.msra.mxu0 0.0
        %732 = vmatprep.subr.mxu0 0.0
        %733 = vmatpush2.msra.mxu0 0.0
        %734 = vmatprep.subr.mxu0 0.0
        %735 = vmatpush2.msra.mxu0 0.0
        %736 = vmatprep.subr.mxu0 0.0
        %737 = vmatpush2.msra.mxu0 0.0
        %738 = vmatprep.subr.mxu0 0.0
        %739 = vmatpush2.msra.mxu0 0.0
        %740 = vmatprep.subr.mxu0 0.0
        %741 = vmatpush2.msra.mxu0 0.0
        %742 = vmatprep.subr.mxu0 0.0
        %743 = vmatpush2.msra.mxu0 0.0
        %744 = vmatprep.subr.mxu0 0.0
        %745 = vmatpush2.msra.mxu0 0.0
        %746 = vmatprep.subr.mxu0 0.0
        %747 = vmatpush2.msra.mxu0 0.0
        %748 = vmatprep.subr.mxu0 0.0
        %749 = vmatpush2.msra.mxu0 0.0
        %750 = vmatprep.subr.mxu0 0.0
        %751 = vmatpush2.msra.mxu0 0.0
        %752 = vmatprep.mubr.f32.mxu0 0.0
        %753 = vmatmul.mubr.f32.gmra.mxu0 %v682
        %v754 = vpop.f32.mrf.mxu0
        %v755 = vadd.f32 %v679, %v754
        %v756 = vpop.f32.mrf.mxu0
        %757 = vdwg.mxu0
        %v758 = vxor.u32 %v755, 2147483648
        %v759 = vmul.f32 %v758, 1.442695
        %v760 = vpow.pop %v759
        %v761 = vadd.f32 %v760, 1.0
        %v762 = vrcp.pop %v761
        %v763 = vmul.f32 1.0, %v762
        %765 = vrot.lane.b32.xlu0 %v763, 32
        %v766 = vpop.permute.xlu0 %765
        %768 = vrot.lane.b32.xlu0 %v763, 64
        %v769 = vpop.permute.xlu0 %768
        %771 = vrot.lane.b32.xlu0 %v763, 96
        %v772 = vpop.permute.xlu0 %771
        %v774 = vsel %vm484, %v763, %v766
        %v775 = vsel %vm486, %v774, %v769
        %v776 = vsel %vm488, %v775, %v772
        %v777 = vlaneseq
        %v778 = vshrl.u32 %v777, 7
        %v779 = vsub.s32 0, %v778
        %v780 = vrot.slane %v776, %v779
        %v781 = vmul.f32 %v564, %v780
        %v782 = vmul.f32 %v565, %v780
        %v783 = vmul.f32 %v566, %v780
        %v784 = vmul.f32 %v567, %v780
        %v785 = vmul.f32 %v568, %v780
        %v786 = vmul.f32 %v569, %v780
        %v787 = vmul.f32 %v570, %v780
        %v788 = vmul.f32 %v571, %v780
        %789 = vst [vmem:[%s284] sm:$0xff] %v781
        %790 = vst [vmem:[%s284 + $0x8] sm:$0xff] %v782
        %791 = vst [vmem:[%s284 + $0x10] sm:$0xff] %v783
        %792 = vst [vmem:[%s284 + $0x18] sm:$0xff] %v784
        %793 = vst [vmem:[%s284 + $0x20] sm:$0xff] %v785
        %794 = vst [vmem:[%s284 + $0x28] sm:$0xff] %v786
        %795 = vst [vmem:[%s284 + $0x30] sm:$0xff] %v787
        %796 = vst [vmem:[%s284 + $0x38] sm:$0xff] %v788
        %s797 = sand.u32 %s163, 1
        %s798 = scalar_lea.sflag [#allocation4], %s797
        %s799 = sand.u32 %s163, 1
        %s800 = smul.addr %s799, 64
        %s801 = scalar_lea.vmem [#allocation7], %s800
        // Predicated region
        $region53: #{tpu_custom_call.1} parent=43 // pred_check
          %p802 = pneg %p173
        $region54: #{tpu_custom_call.1} parent=43 // pred_check_branch
          %804 = sbr.rel (%p802) target = $region56
        $region55: #{tpu_custom_call.1} parent=43 // pred_region
          %s806 = ssub.s32 1024, 1024
          %807 = vsyncadd %s798, %s806
          %s808 = smul.addr %s24, 8
          %s809 = smul.addr %s808, 128
          %s810 = scalar_lea.hbm %s6, %s809
          %s811 = sshll.u32 %s801, 4
          %s812 = int_to_ptr.vmem [resolvable:$true] %s811
          %817 = dma.vmem_to_hbm [thread:$0]  %s812, 1024, %s810, %s798, 128, 128, 8
        $region56: #{tpu_custom_call.1} parent=43 // pred_fallthru
          _
      $region44: #{tpu_custom_call.1} parent=5 // pred_fallthru
        _
      %p818 = scmp.le.s32.totalorder 2, %s19
      // Predicated region
      $region57: #{tpu_custom_call.1} parent=5 // pred_check
        %p819 = pneg %p818
      $region58: #{tpu_custom_call.1} parent=5 // pred_check_branch
        %821 = sbr.rel (%p819) target = $region60
      $region59: #{tpu_custom_call.1} parent=5 // pred_region
        %s822 = ssub.s32 %s19, 2
        // Predicated region
        $region61: #{tpu_custom_call.1} parent=59 // pred_check
          %p823 = pneg %p179
        $region62: #{tpu_custom_call.1} parent=59 // pred_check_branch
          %825 = sbr.rel (%p823) target = $region64
        $region63: #{tpu_custom_call.1} parent=59 // pred_region
          %s826 = sand.u32 %s164, 1
          %s827 = scalar_lea.sflag [#allocation4], %s826
          %s828 = sand.u32 %s164, 1
          %s829 = smul.addr %s828, 64
          %s830 = scalar_lea.vmem [#allocation7], %s829
          %831 = dma.done %s827, 1024
        $region64: #{tpu_custom_call.1} parent=59 // pred_fallthru
          _
      $region60: #{tpu_custom_call.1} parent=5 // pred_fallthru
        _
    $region6: #{tpu_custom_call.1} parent=1 // loop_footer
      %s23 = sadd.s32 1, %s19
    $region7: #{tpu_custom_call.1} parent=1 // loop_footer_branch
      %18 = sbr.rel target = $region3
    $region8: #{tpu_custom_call.1} parent=1 // loop_exit
      _
    %832 = vsyncpa [#allocation3], 1
    %s833 = scalar_lea.sflag [#allocation3], 1
    %834 = vsyncpa %s833, 1
    %835 = vsyncpa [#allocation6], 1
    %836 = vsyncpa [#allocation4], 1
    %s837 = scalar_lea.sflag [#allocation4], 1
    %838 = vsyncpa %s837, 1

</llo_original>
